<compile_context>
chip_gen: v7x
topology: tpu7x:2x2x1
jax: 0.10.0
libtpu: 0.0.40
codegen_flags: <defaults>
</compile_context>

<pallas_src>
import functools

import jax
import jax.numpy as jnp
from jax.experimental import pallas as pl
from jax.experimental.pallas import tpu as pltpu


def _round_up(x, m):
    return ((x + m - 1) // m) * m


def _pad_k(k):
    """Contraction-dim padding: lane aligned and divisible by the K tile."""
    return _round_up(k, 512) if k > 512 else _round_up(k, 128)


@functools.lru_cache(maxsize=1)
def _vmem_capacity_bytes():
    try:
        info = pltpu.get_tpu_info()
        for attr in ("vmem_capacity_bytes", "vmem_bytes", "vmem_size_bytes"):
            v = getattr(info, attr, None)
            if v:
                return int(v)
    except Exception:
        pass
    return 64 * 1024 * 1024  # conservative: v7x per-TensorCore VMEM


def _plan(M, K, N, x_isz, w_isz, out_isz):
    """Pick (tm, tk, tn, K_pad, vmem_limit) from static shapes + VMEM size."""
    K_pad = _pad_k(K)
    N_blk = _round_up(N, 128)
    vmem_cap = _vmem_capacity_bytes()
    budget = int(vmem_cap * 0.7)

    tm = min(512, _round_up(M, 16))  # 16: bf16-sublane friendly row tile

    def bytes_needed(tm_, tk_, tn_):
        return (2 * tm_ * tk_ * x_isz        # x double buffer
                + 2 * tk_ * tn_ * w_isz      # W (double-buffered worst case)
                + 2 * tm_ * tn_ * out_isz    # output double buffer
                + tm_ * tn_ * 4              # f32 accumulator (worst case)
                + 2 * tn_ * 4)               # bias

    # Resident-W path: hold the whole (K_pad x N_blk) weight in VMEM so it is
    # DMA'd once and reused across every row tile (dominant HBM term killed).
    if bytes_needed(tm, K_pad, N_blk) <= budget:
        tk, tn = K_pad, N_blk
    else:
        tk = min(512, K_pad)
        tn = min(512, N_blk)

    # v7x has 2 TensorCores: expose >= 2 parallel grid points when M allows.
    if pl.cdiv(M, tm) * pl.cdiv(N, tn) < 2 and M > 16:
        tm = max(16, _round_up(pl.cdiv(M, 2), 16))

    vmem_limit = int(min(vmem_cap * 0.9,
                         max(2 * bytes_needed(tm, tk, tn), 32 * 1024 * 1024)))
    return tm, tk, tn, K_pad, vmem_limit


def _linear_kernel_f32out(x_ref, w_ref, b_ref, o_ref):
    """f32 output: accumulate directly into o_ref (resident across K axis)."""
    k = pl.program_id(2)

    @pl.when(k == 0)
    def _():
        o_ref[...] = jnp.zeros_like(o_ref)

    o_ref[...] += jnp.dot(
        x_ref[...].astype(w_ref.dtype),          # bf16 into the MXU
        w_ref[...],
        preferred_element_type=jnp.float32,      # f32 accumulation
    )

    @pl.when(k == pl.num_programs(2) - 1)
    def _():
        o_ref[...] += b_ref[...]                 # (1, tn) broadcasts over rows


def _linear_kernel_acc(x_ref, w_ref, b_ref, o_ref, acc_ref):
    """Generic output dtype: f32 scratch accumulator, cast in the epilogue."""
    k = pl.program_id(2)

    @pl.when(k == 0)
    def _():
        acc_ref[...] = jnp.zeros_like(acc_ref)

    acc_ref[...] += jnp.dot(
        x_ref[...].astype(w_ref.dtype),
        w_ref[...],
        preferred_element_type=jnp.float32,
    )

    @pl.when(k == pl.num_programs(2) - 1)
    def _():
        o_ref[...] = (acc_ref[...] + b_ref[...]).astype(o_ref.dtype)


@functools.partial(jax.jit, static_argnames=("use_bf16",))
def linear_pallas(x, w, b, *, use_bf16=True):
    """y = x @ w + b.

    x: [..., D_in]
    w: [D_in, D_out] or [pad_k(D_in), D_out] (pre-padded / pre-cast weights OK)
    b: [D_out]
    """
    orig_shape = x.shape
    K = orig_shape[-1]
    x2 = x.reshape(-1, K)
    M = x2.shape[0]
    N = w.shape[1]
    out_dtype = x.dtype

    # bf16 MXU operands (f32 accumulate).  Skipped if W is already cached bf16.
    if use_bf16 and w.dtype != jnp.bfloat16:
        w = w.astype(jnp.bfloat16)

    tm, tk, tn, K_pad, vmem_limit = _plan(
        M, K, N,
        x_isz=jnp.dtype(x2.dtype).itemsize,
        w_isz=jnp.dtype(w.dtype).itemsize,
        out_isz=jnp.dtype(out_dtype).itemsize,
    )

    # Zero-pad ONLY the contraction dim (exact for matmul + bias).  Partial
    # M / N blocks only touch output elements that Pallas discards.
    if x2.shape[1] != K_pad:
        x2 = jnp.pad(x2, ((0, 0), (0, K_pad - K)))
    if w.shape[0] != K_pad:
        w = jnp.pad(w, ((0, K_pad - w.shape[0]), (0, 0)))
    b2 = b.reshape(1, N).astype(jnp.float32)

    grid = (pl.cdiv(M, tm), pl.cdiv(N, tn), K_pad // tk)

    if out_dtype == jnp.float32:
        kernel = _linear_kernel_f32out
        scratch_shapes = []
    else:
        kernel = _linear_kernel_acc
        scratch_shapes = [pltpu.VMEM((tm, tn), jnp.float32)]

    cost = pl.CostEstimate(
        flops=2 * M * K_pad * N,
        transcendentals=0,
        bytes_accessed=(
            x2.size * x2.dtype.itemsize
            + w.size * w.dtype.itemsize
            + b2.size * 4
            + M * N * jnp.dtype(out_dtype).itemsize
        ),
    )

    out = pl.pallas_call(
        kernel,
        out_shape=jax.ShapeDtypeStruct((M, N), out_dtype),
        grid_spec=pltpu.PrefetchScalarGridSpec(
            num_scalar_prefetch=0,
            grid=grid,
            in_specs=[
                pl.BlockSpec((tm, tk), lambda i, j, k: (i, k)),   # x tile
                pl.BlockSpec((tk, tn), lambda i, j, k: (k, j)),   # W tile
                pl.BlockSpec((1, tn), lambda i, j, k: (0, j)),    # bias tile
            ],
            out_specs=pl.BlockSpec((tm, tn), lambda i, j, k: (i, j)),
            scratch_shapes=scratch_shapes,
        ),
        compiler_params=pltpu.CompilerParams(
            dimension_semantics=("parallel", "parallel", "arbitrary"),
            vmem_limit_bytes=vmem_limit,
        ),
        cost_estimate=cost,
    )(x2, w, b2)

    return out.reshape(orig_shape[:-1] + (N,))


class PreProcessX:
    """JAX/Pallas port of the PyTorch `pre_process_x` module ('lin' branch)."""

    def __init__(self, model, dims, key, use_bf16=True):
        self.model = model
        self.dims = dims
        self.use_bf16 = use_bf16
        if model == "lin":
            d_in, d_out = dims[0], dims[1]
            k_w, k_b = jax.random.split(key)
            # nn.Linear default init: U(-1/sqrt(fan_in), 1/sqrt(fan_in))
            bound = 1.0 / (d_in ** 0.5)
            # stored as [D_in, D_out] (transposed vs torch's [out, in])
            self.w = jax.random.uniform(
                k_w, (d_in, d_out), jnp.float32, -bound, bound
            )
            self.b = jax.random.uniform(
                k_b, (d_out,), jnp.float32, -bound, bound
            )
            # Cache the kernel-ready weight once: cast to bf16 for the MXU and
            # K-zero-padded to the tile boundary (no per-call pad/cast copies).
            k_pad = _pad_k(d_in)
            w_k = self.w.astype(jnp.bfloat16) if use_bf16 else self.w
            if k_pad != d_in:
                w_k = jnp.pad(w_k, ((0, k_pad - d_in), (0, 0)))
            self.w_kernel = w_k
        elif model == "mlp":
            # TODO(synk): external MLP class definition not provided in the
            # spec; would be a chain of linear_pallas calls + activations.
            raise NotImplementedError("mlp branch not implemented")
        elif model == "svd":
            # TODO(synk): torch.svd_lowrank (randomized iterative SVD) has no
            # clean single-kernel Pallas equivalent.
            raise NotImplementedError("svd branch not implemented")

    def __call__(self, x):
        if self.model == "lin":
            return linear_pallas(
                x, self.w_kernel, self.b, use_bf16=self.use_bf16
            )
        raise NotImplementedError


if __name__ == "__main__":
    key = jax.random.PRNGKey(0)
    k_x, k_p = jax.random.split(key)

    N_samples, D_in, D_out = 8, 32, 32
    x = jax.random.normal(k_x, (N_samples, D_in), jnp.float32)

    module = PreProcessX("lin", [D_in, D_out], k_p)
    y = jax.block_until_ready(module(x))

    # sanity check against the plain-JAX f32 reference (bf16 MXU operands with
    # f32 accumulation -> loose tolerance vs the exact f32 result).
    ref = x @ module.w + module.b
    assert y.shape == (N_samples, D_out)
    assert y.dtype == x.dtype
    assert jnp.allclose(y, ref, atol=5e-2, rtol=5e-2), float(
        jnp.max(jnp.abs(y - ref))
    )

    print("KERNEL_OK")
</pallas_src>

<mosaic_0001>
module attributes {stable_mosaic.version = 11 : i64} {
  func.func @_linear_kernel_f32out(%arg0: i32, %arg1: i32, %arg2: i32, %arg3: memref<16x128xf32, #tpu.memory_space<vmem>>, %arg4: memref<128x128xbf16, #tpu.memory_space<vmem>>, %arg5: memref<1x128xf32, #tpu.memory_space<vmem>>, %arg6: memref<16x128xf32, #tpu.memory_space<vmem>>) attributes {dimension_semantics = [#tpu.dimension_semantics<parallel>, #tpu.dimension_semantics<parallel>, #tpu.dimension_semantics<arbitrary>], iteration_bounds = array<i64: 1, 1, 1>, scalar_prefetch = 0 : i64, scratch_operands = 0 : i64, tpu.core_type = #tpu.core_type<tc>, window_params = [{transform_indices = @transform_0, window_bounds = array<i64: 16, 128>}, {transform_indices = @transform_1, window_bounds = array<i64: 128, 128>}, {transform_indices = @transform_2, window_bounds = array<i64: 1, 128>}, {transform_indices = @transform_3, window_bounds = array<i64: 16, 128>}]} {
    %c0_i32 = arith.constant 0 : i32
    %0 = arith.cmpi eq, %arg2, %c0_i32 : i32
    %1 = arith.extui %0 : i1 to i32
    %c0_i32_0 = arith.constant 0 : i32
    %2 = arith.cmpi ne, %1, %c0_i32_0 : i32
    scf.if %2 {
      %cst_10 = arith.constant 0.000000e+00 : f32
      %13 = vector.broadcast %cst_10 : f32 to vector<16x128xf32>
      %c0_11 = arith.constant 0 : index
      %c0_12 = arith.constant 0 : index
      %14 = vector.load %arg6[%c0_11, %c0_12] : memref<16x128xf32, #tpu.memory_space<vmem>>, vector<16x128xf32>
      tpu.vector_store %arg6[%c0_11, %c0_12], %13 {strides = array<i32>} : memref<16x128xf32, #tpu.memory_space<vmem>>, vector<16x128xf32>,
    } else {
    }
    %c0 = arith.constant 0 : index
    %c0_1 = arith.constant 0 : index
    %3 = vector.load %arg6[%c0, %c0_1] : memref<16x128xf32, #tpu.memory_space<vmem>>, vector<16x128xf32>
    %c0_2 = arith.constant 0 : index
    %c0_3 = arith.constant 0 : index
    %4 = vector.load %arg3[%c0_2, %c0_3] : memref<16x128xf32, #tpu.memory_space<vmem>>, vector<16x128xf32>
    %5 = arith.truncf %4 : vector<16x128xf32> to vector<16x128xbf16>
    %c0_4 = arith.constant 0 : index
    %c0_5 = arith.constant 0 : index
    %6 = vector.load %arg4[%c0_4, %c0_5] : memref<128x128xbf16, #tpu.memory_space<vmem>>, vector<128x128xbf16>
    %cst = arith.constant dense<0.000000e+00> : vector<16x128xf32>
    %7 = tpu.matmul %5, %6, %cst {dimension_numbers = #tpu.dot_dimension_numbers<[1], [0], [0], [1], [0, 0, 1, 1], [], []>} : vector<16x128xbf16>, vector<128x128xbf16>, vector<16x128xf32> -> vector<16x128xf32>
    %8 = arith.addf %3, %7 : vector<16x128xf32>
    %c0_6 = arith.constant 0 : index
    %c0_7 = arith.constant 0 : index
    %9 = vector.load %arg6[%c0_6, %c0_7] : memref<16x128xf32, #tpu.memory_space<vmem>>, vector<16x128xf32>
    tpu.vector_store %arg6[%c0_6, %c0_7], %8 {strides = array<i32>} : memref<16x128xf32, #tpu.memory_space<vmem>>, vector<16x128xf32>,
    %c0_i32_8 = arith.constant 0 : i32
    %10 = arith.cmpi eq, %arg2, %c0_i32_8 : i32
    %11 = arith.extui %10 : i1 to i32
    %c0_i32_9 = arith.constant 0 : i32
    %12 = arith.cmpi ne, %11, %c0_i32_9 : i32
    scf.if %12 {
      %c0_10 = arith.constant 0 : index
      %c0_11 = arith.constant 0 : index
      %13 = vector.load %arg6[%c0_10, %c0_11] : memref<16x128xf32, #tpu.memory_space<vmem>>, vector<16x128xf32>
      %c0_12 = arith.constant 0 : index
      %c0_13 = arith.constant 0 : index
      %14 = vector.load %arg5[%c0_12, %c0_13] : memref<1x128xf32, #tpu.memory_space<vmem>>, vector<1x128xf32>
      %15 = vector.broadcast %14 : vector<1x128xf32> to vector<16x128xf32>
      %16 = arith.addf %13, %15 : vector<16x128xf32>
      %c0_14 = arith.constant 0 : index
      %c0_15 = arith.constant 0 : index
      %17 = vector.load %arg6[%c0_14, %c0_15] : memref<16x128xf32, #tpu.memory_space<vmem>>, vector<16x128xf32>
      tpu.vector_store %arg6[%c0_14, %c0_15], %16 {strides = array<i32>} : memref<16x128xf32, #tpu.memory_space<vmem>>, vector<16x128xf32>,
    } else {
    }
    return
  }
  func.func @transform_0(%arg0: i32, %arg1: i32, %arg2: i32) -> (i32, i32) {
    %c0_i32 = arith.constant 0 : i32
    return %arg0, %arg2 : i32, i32
  }
  func.func @transform_1(%arg0: i32, %arg1: i32, %arg2: i32) -> (i32, i32) {
    %c0_i32 = arith.constant 0 : i32
    return %arg2, %arg1 : i32, i32
  }
  func.func @transform_2(%arg0: i32, %arg1: i32, %arg2: i32) -> (i32, i32) {
    %c0_i32 = arith.constant 0 : i32
    %c0_i32_0 = arith.constant 0 : i32
    return %c0_i32, %arg1 : i32, i32
  }
  func.func @transform_3(%arg0: i32, %arg1: i32, %arg2: i32) -> (i32, i32) {
    %c0_i32 = arith.constant 0 : i32
    return %arg0, %arg1 : i32, i32
  }
}

</mosaic_0001>

<llo_original>
// kernel: linear_pallas.1
$region0: #{linear_pallas.1}
  #allocation0 [shape = 'u32[]', space=smem, size = 0x4, offset = 0x4, fixed_abs, tag = 'smem constant byte address 0x4 - core index']
  #allocation1 [shape = 'u32[144,128]{1,0:T(1,128)}', space=vmem, size = 0x12000, scoped, tag = 'internal scratch']
  %s0 = inlined_call_operand.vmem [shape: f32[8,128], index: 0, kind: input, shape index: {}]
  %s1 = inlined_call_operand.vmem [shape: bf16[128,32], index: 1, kind: input, shape index: {}]
  %s2 = inlined_call_operand.vmem [shape: f32[1,32], index: 2, kind: input, shape index: {}]
  %s3 = inlined_call_operand.hbm [shape: f32[8,32], index: 3, kind: output, shape index: {}]
  %s4 = sld [smem:[#allocation0]]
  $region30: #{linear_pallas.1} parent=0
    _
  %s6 = ssub.s32 1, %s4
  %s7 = scalar_select 0, %s6, %s4
  $region1: #{linear_pallas.1} parent=0
    #allocation2 [shape = 'u8[8192]{0}', space=vmem, size = 0x2000, scoped, tag = 'output window, operand 0, single buffered']
    #allocation3 [shape = 's32[1]{0}', space=sflag, size = 0x4, scoped, tag = 'scoped memory for linear_pallas.1']
    %8 = vsyncpa [#allocation3], 0
    // Predicated region
    $region2: #{linear_pallas.1} parent=1 // pred_check
      _
    $region3: #{linear_pallas.1} parent=1 // pred_check_branch
      %10 = sbr.rel (0) target = $region5
    $region4: #{linear_pallas.1} parent=1 // pred_region
      _
    $region5: #{linear_pallas.1} parent=1 // pred_fallthru
      _
    // Predicated region
    $region6: #{linear_pallas.1} parent=1 // pred_check
      _
    $region7: #{linear_pallas.1} parent=1 // pred_check_branch
      %12 = sbr.rel (0) target = $region9
    $region8: #{linear_pallas.1} parent=1 // pred_region
      _
    $region9: #{linear_pallas.1} parent=1 // pred_fallthru
      _
    // Predicated region
    $region10: #{linear_pallas.1} parent=1 // pred_check
      _
    $region11: #{linear_pallas.1} parent=1 // pred_check_branch
      %14 = sbr.rel (0) target = $region13
    $region12: #{linear_pallas.1} parent=1 // pred_region
      _
    $region13: #{linear_pallas.1} parent=1 // pred_fallthru
      _
    %p16 = scmp.eq.s32.totalorder 0, 0
    // Predicated region
    $region14: #{linear_pallas.1} parent=1 // pred_check
      %p17 = pneg %p16
    $region15: #{linear_pallas.1} parent=1 // pred_check_branch
      %19 = sbr.rel (%p17) target = $region17
    $region16: #{linear_pallas.1} parent=1 // pred_region
      %20 = vst [vmem:[#allocation2] sm:$0xff] 0.0
      %21 = vst [vmem:[#allocation2 + $0x8] sm:$0xff] 0.0
    $region17: #{linear_pallas.1} parent=1 // pred_fallthru
      _
    %v22 = vld [vmem:[#allocation2] sm:$0xff]
    %v23 = vld [vmem:[#allocation2 + $0x8] sm:$0xff]
    %v24 = vld [vmem:[%s0] sm:$0xff]
    %v25 = vld [vmem:[%s0 + $0x8] sm:$0xff]
    %v26 = vpack.c.bf16 %v25, %v24
    %v27 = vld [vmem:[%s1] sm:$0xf]
    %v28 = vld [vmem:[%s1 + $0x4] sm:$0xf]
    %v29 = vld [vmem:[%s1 + $0x8] sm:$0xf]
    %v30 = vld [vmem:[%s1 + $0xc] sm:$0xf]
    %v31 = vld [vmem:[%s1 + $0x10] sm:$0xf]
    %v32 = vld [vmem:[%s1 + $0x14] sm:$0xf]
    %v33 = vld [vmem:[%s1 + $0x18] sm:$0xf]
    %v34 = vld [vmem:[%s1 + $0x1c] sm:$0xf]
    %v35 = vld [vmem:[%s1 + $0x20] sm:$0xf]
    %v36 = vld [vmem:[%s1 + $0x24] sm:$0xf]
    %v37 = vld [vmem:[%s1 + $0x28] sm:$0xf]
    %v38 = vld [vmem:[%s1 + $0x2c] sm:$0xf]
    %v39 = vld [vmem:[%s1 + $0x30] sm:$0xf]
    %v40 = vld [vmem:[%s1 + $0x34] sm:$0xf]
    %v41 = vld [vmem:[%s1 + $0x38] sm:$0xf]
    %v42 = vld [vmem:[%s1 + $0x3c] sm:$0xf]
    %v59 = vunpack.c.l.b16 %v27
    %v60 = vunpack.c.l.b16 %v28
    %v61 = vunpack.c.l.b16 %v29
    %v62 = vunpack.c.l.b16 %v30
    %v63 = vunpack.c.l.b16 %v31
    %v64 = vunpack.c.l.b16 %v32
    %v65 = vunpack.c.l.b16 %v33
    %v66 = vunpack.c.l.b16 %v34
    %v67 = vunpack.c.l.b16 %v35
    %v68 = vunpack.c.l.b16 %v36
    %v69 = vunpack.c.l.b16 %v37
    %v70 = vunpack.c.l.b16 %v38
    %v71 = vunpack.c.l.b16 %v39
    %v72 = vunpack.c.l.b16 %v40
    %v73 = vunpack.c.l.b16 %v41
    %v74 = vunpack.c.l.b16 %v42
    %v75 = vpack.c.b16 %v60, %v59
    %v76 = vpack.c.b16 %v62, %v61
    %v77 = vpack.c.b16 %v64, %v63
    %v78 = vpack.c.b16 %v66, %v65
    %v79 = vpack.c.b16 %v68, %v67
    %v80 = vpack.c.b16 %v70, %v69
    %v81 = vpack.c.b16 %v72, %v71
    %v82 = vpack.c.b16 %v74, %v73
    %91 = vmatprep.subr.bf16.mxu0 0
    %92 = vmatpush1.bf16.msra.mxu0 %v75
    %93 = vmatprep.subr.bf16.mxu0 0
    %94 = vmatpush1.bf16.msra.mxu0 %v76
    %95 = vmatprep.subr.bf16.mxu0 0
    %96 = vmatpush1.bf16.msra.mxu0 %v77
    %97 = vmatprep.subr.bf16.mxu0 0
    %98 = vmatpush1.bf16.msra.mxu0 %v78
    %99 = vmatprep.subr.bf16.mxu0 0
    %100 = vmatpush1.bf16.msra.mxu0 %v79
    %101 = vmatprep.subr.bf16.mxu0 0
    %102 = vmatpush1.bf16.msra.mxu0 %v80
    %103 = vmatprep.subr.bf16.mxu0 0
    %104 = vmatpush1.bf16.msra.mxu0 %v81
    %105 = vmatprep.subr.bf16.mxu0 0
    %106 = vmatpush1.bf16.msra.mxu0 %v82
    %107 = vmatprep.subr.bf16.mxu0 0
    %108 = vmatpush1.bf16.msra.mxu0 0
    %109 = vmatprep.subr.bf16.mxu0 0
    %110 = vmatpush1.bf16.msra.mxu0 0
    %111 = vmatprep.subr.bf16.mxu0 0
    %112 = vmatpush1.bf16.msra.mxu0 0
    %113 = vmatprep.subr.bf16.mxu0 0
    %114 = vmatpush1.bf16.msra.mxu0 0
    %115 = vmatprep.subr.bf16.mxu0 0
    %116 = vmatpush1.bf16.msra.mxu0 0
    %117 = vmatprep.subr.bf16.mxu0 0
    %118 = vmatpush1.bf16.msra.mxu0 0
    %119 = vmatprep.subr.bf16.mxu0 0
    %120 = vmatpush1.bf16.msra.mxu0 0
    %121 = vmatprep.subr.bf16.mxu0 0
    %122 = vmatpush1.bf16.msra.mxu0 0
    %123 = vmatprep.mubr.bf16.mxu0 0
    %124 = vmatmul.mubr.bf16.gmra.mrb[0].mxu0 %v26
    %v125 = vpop.f32.mrb[0].mxu0
    %v126 = vadd.f32 0.0, %v125
    %v127 = vpop.f32.mrb[0].mxu0
    %v128 = vpop.f32.mrb[0].mxu0
    %v129 = vadd.f32 0.0, %v128
    %v130 = vpop.f32.mrb[0].mxu0
    %131 = vdwg.mxu0
    %v132 = vadd.f32 %v22, %v126
    %v133 = vadd.f32 %v23, %v129
    %134 = vst [vmem:[#allocation2] sm:$0xff] %v132
    %135 = vst [vmem:[#allocation2 + $0x8] sm:$0xff] %v133
    // Predicated region
    $region18: #{linear_pallas.1} parent=1 // pred_check
      %p136 = pneg %p16
    $region19: #{linear_pallas.1} parent=1 // pred_check_branch
      %138 = sbr.rel (%p136) target = $region21
    $region20: #{linear_pallas.1} parent=1 // pred_region
      %v139 = vld [vmem:[#allocation2] sm:$0xff]
      %v140 = vld [vmem:[#allocation2 + $0x8] sm:$0xff]
      %v141 = vld [vmem:[%s2] sm:$0x1]
      %v143 = vlaneseq
      %v144 = vshrl.u32 %v143, 7
      %v145 = vsub.s32 0, %v144
      %v146 = vrot.slane %v141, %v145
      %v148 = vadd.f32 %v139, %v146
      %v149 = vadd.f32 %v140, %v146
      %150 = vst [vmem:[#allocation2] sm:$0xff] %v148
      %151 = vst [vmem:[#allocation2 + $0x8] sm:$0xff] %v149
    $region21: #{linear_pallas.1} parent=1 // pred_fallthru
      _
    // Predicated region
    $region22: #{linear_pallas.1} parent=1 // pred_check
      _
    $region23: #{linear_pallas.1} parent=1 // pred_check_branch
      %153 = sbr.rel (0) target = $region25
    $region24: #{linear_pallas.1} parent=1 // pred_region
      %s155 = ssub.s32 256, 128
      %156 = vsyncadd [#allocation3], %s155
      %s157 = sshll.u32 [#allocation2], 4
      %s158 = int_to_ptr.vmem [resolvable:$true] %s157
      %163 = dma.vmem_to_hbm [thread:$0]  %s158, 128, %s3, [#allocation3], 128, 128, 8
    $region25: #{linear_pallas.1} parent=1 // pred_fallthru
      _
    // Predicated region
    $region26: #{linear_pallas.1} parent=1 // pred_check
      _
    $region27: #{linear_pallas.1} parent=1 // pred_check_branch
      %165 = sbr.rel (0) target = $region29
    $region28: #{linear_pallas.1} parent=1 // pred_region
      %166 = dma.done [#allocation3], 256
    $region29: #{linear_pallas.1} parent=1 // pred_fallthru
      _
    %167 = vsyncpa [#allocation3], 1

</llo_original>
